<compile_context>
chip_gen: v5e
topology: v5e:2x2
jax: 0.10.0
libtpu: 0.0.40
codegen_flags: <defaults>
</compile_context>

<pallas_src>
import math

import jax
import jax.numpy as jnp
from jax import lax
from jax.experimental import pallas as pl
from jax.experimental.pallas import tpu as pltpu

KERNEL_SIZE = 5
SIGMA = 1.0
PAD = KERNEL_SIZE // 2  # = 2


def _gaussian_kernel1d(kernel_size: int, sigma: float):
    """Matches torchvision _get_gaussian_kernel1d exactly (python floats)."""
    ksize_half = (kernel_size - 1) * 0.5
    xs = [(-ksize_half + i) for i in range(kernel_size)]
    pdf = [math.exp(-0.5 * (v / sigma) ** 2) for v in xs]
    s = sum(pdf)
    return [p / s for p in pdf]


_K1D = _gaussian_kernel1d(KERNEL_SIZE, SIGMA)
_K2D = [[_K1D[i] * _K1D[j] for j in range(KERNEL_SIZE)] for i in range(KERNEL_SIZE)]


def _shift_reflect(x, d, axis):
    """result[..., h, ...] = x[..., reflect(h + d), ...]  (reflect pad, |d| <= 2).

    Built entirely from static slices of the register-resident value + one
    concatenate, so no ref store/reload round-trip is needed.
    """
    n = x.shape[axis]
    if d == 0:
        return x
    if d > 0:
        parts = [lax.slice_in_dim(x, d, n, axis=axis)]
        parts += [lax.slice_in_dim(x, n - 2 - t, n - 1 - t, axis=axis)
                  for t in range(d)]
    else:
        dd = -d
        parts = [lax.slice_in_dim(x, dd - t, dd - t + 1, axis=axis)
                 for t in range(dd)]
        parts += [lax.slice_in_dim(x, 0, n - dd, axis=axis)]
    return jnp.concatenate(parts, axis=axis)


def _blur_kernel(x_ref, o_ref):
    # x_ref / o_ref : (Cb, H, W) image planes; separable 5-tap, all in registers.
    x = x_ref[...].astype(jnp.float32)

    # ---- vertical (sublane, axis=1) 5-tap pass with reflect boundaries
    tmp = jnp.float32(_K1D[PAD]) * x
    for d in range(-PAD, PAD + 1):
        if d == 0:
            continue
        tmp = tmp + jnp.float32(_K1D[d + PAD]) * _shift_reflect(x, d, axis=1)

    # ---- horizontal (lane, axis=2) 5-tap pass with reflect boundaries
    acc = jnp.float32(_K1D[PAD]) * tmp
    for d in range(-PAD, PAD + 1):
        if d == 0:
            continue
        acc = acc + jnp.float32(_K1D[d + PAD]) * _shift_reflect(tmp, d, axis=2)

    if jnp.issubdtype(o_ref.dtype, jnp.integer):
        acc = jnp.round(acc)  # torchvision rounds before casting back to ints
    o_ref[...] = acc.astype(o_ref.dtype)


def gaussian_filter(x: jnp.ndarray) -> jnp.ndarray:
    """x: (N, C, H, W) -> (N, C, H, W), 5x5 Gaussian blur, sigma=1, reflect pad."""
    N, C, H, W = x.shape
    assert H > PAD and W > PAD, "reflect padding requires H, W > 2"

    B = N * C
    xr = x.reshape(B, H, W)

    # ---- generation-aware VMEM limit -------------------------------------
    try:
        vmem_cap = int(pltpu.get_tpu_info().vmem_capacity_bytes)
    except Exception:  # fall back to the smallest per-TC VMEM (v7x)
        vmem_cap = 64 * 1024 * 1024
    frac = 0.75 if vmem_cap >= 96 * 1024 * 1024 else 0.6
    vmem_limit = int(vmem_cap * frac)

    # ---- planes per grid step, from the full footprint --------------------
    # 2x double-buffered input + 2x double-buffered output blocks (native
    # dtype) + ~5 f32-plane compute temporaries (x, tmp, acc, shifted slices).
    itemsize = jnp.dtype(x.dtype).itemsize
    per_plane = H * W * (4 * itemsize + 5 * 4)
    usable = int(vmem_limit * 0.6)            # headroom for compiler scratch
    max_cb = max(1, usable // max(per_plane, 1))
    max_cb = min(max_cb, max(1, B // 2))      # >= 2 grid steps (v7x: both TCs busy)

    cb = 1
    for d in range(1, B + 1):
        if B % d == 0 and d <= max_cb:
            cb = d

    # TODO(synk): very large single planes (e.g. 4k x 4k f32 > v7x VMEM) need a
    # second grid axis over H with a 2-row halo (row-strip tiling).
    # TODO(synk): for W << 128 the lane axis is under-utilized; folding Cb*W
    # onto the lane axis (masked reflect at plane seams) would raise store-path
    # utilization — peak throughput needs W to be a multiple of ~128.

    out = pl.pallas_call(
        _blur_kernel,
        out_shape=jax.ShapeDtypeStruct((B, H, W), x.dtype),
        grid=(B // cb,),
        in_specs=[pl.BlockSpec((cb, H, W), lambda b: (b, 0, 0))],
        out_specs=pl.BlockSpec((cb, H, W), lambda b: (b, 0, 0)),
        compiler_params=pltpu.CompilerParams(
            dimension_semantics=("parallel",),
            vmem_limit_bytes=vmem_limit,
        ),
    )(xr)
    return out.reshape(N, C, H, W)


def _reference(x: jnp.ndarray) -> jnp.ndarray:
    """Pure-JAX reference of TF.gaussian_blur (non-separable 2D form)."""
    N, C, H, W = x.shape
    xp = jnp.pad(x, ((0, 0), (0, 0), (PAD, PAD), (PAD, PAD)), mode="reflect")
    out = jnp.zeros((N, C, H, W), jnp.float32)
    for i in range(KERNEL_SIZE):
        for j in range(KERNEL_SIZE):
            out = out + _K2D[i][j] * xp[:, :, i:i + H, j:j + W].astype(jnp.float32)
    return out.astype(x.dtype)


if __name__ == "__main__":
    key = jax.random.PRNGKey(0)
    x = jax.random.normal(key, (2, 4, 16, 16), dtype=jnp.float32)

    y = gaussian_filter(x)
    y = jax.block_until_ready(y)

    y_ref = _reference(x)
    assert y.shape == (2, 4, 16, 16)
    assert jnp.allclose(y, y_ref, atol=1e-5, rtol=1e-5)

    print("KERNEL_OK")
</pallas_src>

<mosaic_0001>
module attributes {stable_mosaic.version = 11 : i64} {
  func.func @_blur_kernel(%arg0: i32, %arg1: memref<4x16x16xf32, #tpu.memory_space<vmem>>, %arg2: memref<4x16x16xf32, #tpu.memory_space<vmem>>) attributes {dimension_semantics = [#tpu.dimension_semantics<parallel>], iteration_bounds = array<i64: 2>, scalar_prefetch = 0 : i64, scratch_operands = 0 : i64, tpu.core_type = #tpu.core_type<tc>, window_params = [{transform_indices = @transform_0, window_bounds = array<i64: 4, 16, 16>}, {transform_indices = @transform_1, window_bounds = array<i64: 4, 16, 16>}]} {
    %c0 = arith.constant 0 : index
    %c0_0 = arith.constant 0 : index
    %c0_1 = arith.constant 0 : index
    %0 = vector.load %arg1[%c0, %c0_0, %c0_1] : memref<4x16x16xf32, #tpu.memory_space<vmem>>, vector<4x16x16xf32>
    %cst = arith.constant 0.402619958 : f32
    %1 = vector.broadcast %cst : f32 to vector<4x16x16xf32>
    %2 = arith.mulf %1, %0 : vector<4x16x16xf32>
    %3 = vector.extract_strided_slice %0 {offsets = [0, 2, 0], sizes = [4, 1, 16], strides = [1, 1, 1]} : vector<4x16x16xf32> to vector<4x1x16xf32>
    %4 = vector.extract_strided_slice %0 {offsets = [0, 1, 0], sizes = [4, 1, 16], strides = [1, 1, 1]} : vector<4x16x16xf32> to vector<4x1x16xf32>
    %5 = vector.extract_strided_slice %0 {offsets = [0, 0, 0], sizes = [4, 14, 16], strides = [1, 1, 1]} : vector<4x16x16xf32> to vector<4x14x16xf32>
    %6 = tpu.concatenate %3, %4, %5 in 1 : vector<4x1x16xf32>, vector<4x1x16xf32>, vector<4x14x16xf32> -> vector<4x16x16xf32>
    %cst_2 = arith.constant 0.054488685 : f32
    %7 = vector.broadcast %cst_2 : f32 to vector<4x16x16xf32>
    %8 = arith.mulf %7, %6 : vector<4x16x16xf32>
    %9 = arith.addf %2, %8 : vector<4x16x16xf32>
    %10 = vector.extract_strided_slice %0 {offsets = [0, 1, 0], sizes = [4, 1, 16], strides = [1, 1, 1]} : vector<4x16x16xf32> to vector<4x1x16xf32>
    %11 = vector.extract_strided_slice %0 {offsets = [0, 0, 0], sizes = [4, 15, 16], strides = [1, 1, 1]} : vector<4x16x16xf32> to vector<4x15x16xf32>
    %12 = tpu.concatenate %10, %11 in 1 : vector<4x1x16xf32>, vector<4x15x16xf32> -> vector<4x16x16xf32>
    %cst_3 = arith.constant 0.244201347 : f32
    %13 = vector.broadcast %cst_3 : f32 to vector<4x16x16xf32>
    %14 = arith.mulf %13, %12 : vector<4x16x16xf32>
    %15 = arith.addf %9, %14 : vector<4x16x16xf32>
    %16 = vector.extract_strided_slice %0 {offsets = [0, 1, 0], sizes = [4, 15, 16], strides = [1, 1, 1]} : vector<4x16x16xf32> to vector<4x15x16xf32>
    %17 = vector.extract_strided_slice %0 {offsets = [0, 14, 0], sizes = [4, 1, 16], strides = [1, 1, 1]} : vector<4x16x16xf32> to vector<4x1x16xf32>
    %18 = tpu.concatenate %16, %17 in 1 : vector<4x15x16xf32>, vector<4x1x16xf32> -> vector<4x16x16xf32>
    %cst_4 = arith.constant 0.244201347 : f32
    %19 = vector.broadcast %cst_4 : f32 to vector<4x16x16xf32>
    %20 = arith.mulf %19, %18 : vector<4x16x16xf32>
    %21 = arith.addf %15, %20 : vector<4x16x16xf32>
    %22 = vector.extract_strided_slice %0 {offsets = [0, 2, 0], sizes = [4, 14, 16], strides = [1, 1, 1]} : vector<4x16x16xf32> to vector<4x14x16xf32>
    %23 = vector.extract_strided_slice %0 {offsets = [0, 14, 0], sizes = [4, 1, 16], strides = [1, 1, 1]} : vector<4x16x16xf32> to vector<4x1x16xf32>
    %24 = vector.extract_strided_slice %0 {offsets = [0, 13, 0], sizes = [4, 1, 16], strides = [1, 1, 1]} : vector<4x16x16xf32> to vector<4x1x16xf32>
    %25 = tpu.concatenate %22, %23, %24 in 1 : vector<4x14x16xf32>, vector<4x1x16xf32>, vector<4x1x16xf32> -> vector<4x16x16xf32>
    %cst_5 = arith.constant 0.054488685 : f32
    %26 = vector.broadcast %cst_5 : f32 to vector<4x16x16xf32>
    %27 = arith.mulf %26, %25 : vector<4x16x16xf32>
    %28 = arith.addf %21, %27 : vector<4x16x16xf32>
    %cst_6 = arith.constant 0.402619958 : f32
    %29 = vector.broadcast %cst_6 : f32 to vector<4x16x16xf32>
    %30 = arith.mulf %29, %28 : vector<4x16x16xf32>
    %31 = vector.extract_strided_slice %28 {offsets = [0, 0, 2], sizes = [4, 16, 1], strides = [1, 1, 1]} : vector<4x16x16xf32> to vector<4x16x1xf32>
    %32 = vector.extract_strided_slice %28 {offsets = [0, 0, 1], sizes = [4, 16, 1], strides = [1, 1, 1]} : vector<4x16x16xf32> to vector<4x16x1xf32>
    %33 = vector.extract_strided_slice %28 {offsets = [0, 0, 0], sizes = [4, 16, 14], strides = [1, 1, 1]} : vector<4x16x16xf32> to vector<4x16x14xf32>
    %34 = tpu.concatenate %31, %32, %33 in 2 : vector<4x16x1xf32>, vector<4x16x1xf32>, vector<4x16x14xf32> -> vector<4x16x16xf32>
    %cst_7 = arith.constant 0.054488685 : f32
    %35 = vector.broadcast %cst_7 : f32 to vector<4x16x16xf32>
    %36 = arith.mulf %35, %34 : vector<4x16x16xf32>
    %37 = arith.addf %30, %36 : vector<4x16x16xf32>
    %38 = vector.extract_strided_slice %28 {offsets = [0, 0, 1], sizes = [4, 16, 1], strides = [1, 1, 1]} : vector<4x16x16xf32> to vector<4x16x1xf32>
    %39 = vector.extract_strided_slice %28 {offsets = [0, 0, 0], sizes = [4, 16, 15], strides = [1, 1, 1]} : vector<4x16x16xf32> to vector<4x16x15xf32>
    %40 = tpu.concatenate %38, %39 in 2 : vector<4x16x1xf32>, vector<4x16x15xf32> -> vector<4x16x16xf32>
    %cst_8 = arith.constant 0.244201347 : f32
    %41 = vector.broadcast %cst_8 : f32 to vector<4x16x16xf32>
    %42 = arith.mulf %41, %40 : vector<4x16x16xf32>
    %43 = arith.addf %37, %42 : vector<4x16x16xf32>
    %44 = vector.extract_strided_slice %28 {offsets = [0, 0, 1], sizes = [4, 16, 15], strides = [1, 1, 1]} : vector<4x16x16xf32> to vector<4x16x15xf32>
    %45 = vector.extract_strided_slice %28 {offsets = [0, 0, 14], sizes = [4, 16, 1], strides = [1, 1, 1]} : vector<4x16x16xf32> to vector<4x16x1xf32>
    %46 = tpu.concatenate %44, %45 in 2 : vector<4x16x15xf32>, vector<4x16x1xf32> -> vector<4x16x16xf32>
    %cst_9 = arith.constant 0.244201347 : f32
    %47 = vector.broadcast %cst_9 : f32 to vector<4x16x16xf32>
    %48 = arith.mulf %47, %46 : vector<4x16x16xf32>
    %49 = arith.addf %43, %48 : vector<4x16x16xf32>
    %50 = vector.extract_strided_slice %28 {offsets = [0, 0, 2], sizes = [4, 16, 14], strides = [1, 1, 1]} : vector<4x16x16xf32> to vector<4x16x14xf32>
    %51 = vector.extract_strided_slice %28 {offsets = [0, 0, 14], sizes = [4, 16, 1], strides = [1, 1, 1]} : vector<4x16x16xf32> to vector<4x16x1xf32>
    %52 = vector.extract_strided_slice %28 {offsets = [0, 0, 13], sizes = [4, 16, 1], strides = [1, 1, 1]} : vector<4x16x16xf32> to vector<4x16x1xf32>
    %53 = tpu.concatenate %50, %51, %52 in 2 : vector<4x16x14xf32>, vector<4x16x1xf32>, vector<4x16x1xf32> -> vector<4x16x16xf32>
    %cst_10 = arith.constant 0.054488685 : f32
    %54 = vector.broadcast %cst_10 : f32 to vector<4x16x16xf32>
    %55 = arith.mulf %54, %53 : vector<4x16x16xf32>
    %56 = arith.addf %49, %55 : vector<4x16x16xf32>
    %c0_11 = arith.constant 0 : index
    %c0_12 = arith.constant 0 : index
    %c0_13 = arith.constant 0 : index
    %57 = vector.load %arg2[%c0_11, %c0_12, %c0_13] : memref<4x16x16xf32, #tpu.memory_space<vmem>>, vector<4x16x16xf32>
    tpu.vector_store %arg2[%c0_11, %c0_12, %c0_13], %56 {strides = array<i32>} : memref<4x16x16xf32, #tpu.memory_space<vmem>>, vector<4x16x16xf32>,
    return
  }
  func.func @transform_0(%arg0: i32) -> (i32, i32, i32) {
    %c0_i32 = arith.constant 0 : i32
    %c0_i32_0 = arith.constant 0 : i32
    %c0_i32_1 = arith.constant 0 : i32
    return %arg0, %c0_i32, %c0_i32_0 : i32, i32, i32
  }
  func.func @transform_1(%arg0: i32) -> (i32, i32, i32) {
    %c0_i32 = arith.constant 0 : i32
    %c0_i32_0 = arith.constant 0 : i32
    %c0_i32_1 = arith.constant 0 : i32
    return %arg0, %c0_i32, %c0_i32_0 : i32, i32, i32
  }
}

</mosaic_0001>

<llo_original>
// kernel: tpu_custom_call.1
$region0: #{tpu_custom_call.1}
  #allocation0 [shape = 'u32[]', space=smem, size = 0x4, offset = 0x4, fixed_abs, tag = 'smem constant byte address 0x4 - core index']
  #allocation1 [shape = 'u32[72,128]{1,0:T(1,128)}', space=vmem, size = 0x9000, scoped, tag = 'internal scratch']
  %s0 = inlined_call_operand.hbm [shape: f32[8,16,16], index: 0, kind: input, shape index: {}]
  %s1 = inlined_call_operand.hbm [shape: f32[8,16,16], index: 1, kind: output, shape index: {}]
  %s2 = sld [smem:[#allocation0]]
  $region41: #{tpu_custom_call.1} parent=0
    _
  %s4 = ssub.s32 1, %s2
  %s5 = scalar_select 0, %s4, %s2
  $region1: #{tpu_custom_call.1} parent=0
    #allocation2 [shape = 'u8[65536]{0}', space=vmem, size = 0x10000, scoped, tag = 'input window, operand 0']
    #allocation3 [shape = 's32[2]{0}', space=sflag, size = 0x8, scoped, tag = 'scoped memory for tpu_custom_call.1']
    #allocation4 [shape = 's32[2]{0}', space=sflag, size = 0x8, scoped, tag = 'scoped memory for tpu_custom_call.1']
    #allocation5 [shape = 'u8[65536]{0}', space=vmem, size = 0x10000, scoped, tag = 'output window, operand 0']
    %6 = vsyncpa [#allocation3], 0
    %s7 = scalar_lea.sflag [#allocation3], 1
    %8 = vsyncpa %s7, 0
    %9 = vsyncpa [#allocation4], 0
    %s10 = scalar_lea.sflag [#allocation4], 1
    %11 = vsyncpa %s10, 0
    loop: start=0, step=1, limit=4
    $region2: #{tpu_custom_call.1} parent=1 // loop_pre_header
      _
    $region3: #{tpu_custom_call.1} parent=1 // loop_header
      %s13 = sphi 0, %s17
      %p14 = scmp.ge.s32.totalorder %s13, 4
      %s23 = sphi 0, %s25
      %s26 = sphi 0, %s23
      %s27 = sphi 0, %s26
      %s43 = sphi 0, %s27
      %s49 = sphi 0, %s51
      %s52 = sphi 0, %s49
      %s53 = sphi 0, %s52
      %s69 = sphi 0, %s53
    $region4: #{tpu_custom_call.1} parent=1 // loop_header_branch
      %16 = sbr.rel (%p14) target = $region8
    $region5: #{tpu_custom_call.1} parent=1 // loop_body
      %s18 = ssub.s32 %s13, 1
      %s19 = ssub.s32 %s13, 2
      %s20 = sadd.s32 %s13, 1
      %s21 = ssub.s32 %s13, %s20
      %p22 = scmp.eq.s32.totalorder %s21, 0
      %s24 = sadd.s32 %s23, 1
      %s25 = scalar_select %p22, %s23, %s24
      %p28 = pneg %p22
      %p29 = scmp.eq.s32.totalorder %s13, 1
      %p30 = por %p28, %p29
      %p31 = scmp.ne.s32.totalorder %s23, %s26
      %p32 = scmp.eq.s32.totalorder %s13, 0
      %p33 = por %p31, %p32
      %p34 = scmp.ne.s32.totalorder %s23, %s26
      %p35 = scmp.eq.s32.totalorder %s18, 1
      %p36 = por %p34, %p35
      %p37 = scmp.ne.s32.totalorder %s26, %s27
      %p38 = scmp.eq.s32.totalorder %s18, 0
      %p39 = por %p37, %p38
      %p40 = scmp.ne.s32.totalorder %s26, %s27
      %p41 = scmp.eq.s32.totalorder %s19, 1
      %p42 = por %p40, %p41
      %p44 = scmp.ne.s32.totalorder %s27, %s43
      %p45 = scmp.eq.s32.totalorder %s19, 0
      %p46 = por %p44, %p45
      %s47 = ssub.s32 %s13, %s20
      %p48 = scmp.eq.s32.totalorder %s47, 0
      %s50 = sadd.s32 %s49, 1
      %s51 = scalar_select %p48, %s49, %s50
      %p54 = pneg %p48
      %p55 = scmp.eq.s32.totalorder %s13, 1
      %p56 = por %p54, %p55
      %p57 = scmp.ne.s32.totalorder %s49, %s52
      %p58 = scmp.eq.s32.totalorder %s13, 0
      %p59 = por %p57, %p58
      %p60 = scmp.ne.s32.totalorder %s49, %s52
      %p61 = scmp.eq.s32.totalorder %s18, 1
      %p62 = por %p60, %p61
      %p63 = scmp.ne.s32.totalorder %s52, %s53
      %p64 = scmp.eq.s32.totalorder %s18, 0
      %p65 = por %p63, %p64
      %p66 = scmp.ne.s32.totalorder %s52, %s53
      %p67 = scmp.eq.s32.totalorder %s19, 1
      %p68 = por %p66, %p67
      %p70 = scmp.ne.s32.totalorder %s53, %s69
      %p71 = scmp.eq.s32.totalorder %s19, 0
      %p72 = por %p70, %p71
      %p73 = scmp.le.s32.totalorder 1, %s13
      %p74 = scmp.lt.s32.totalorder %s13, 3
      %p75 = pnand %p73, %p74
      %p76 = pneg %p75
      // Predicated region
      $region9: #{tpu_custom_call.1} parent=5 // pred_check
        _
      $region10: #{tpu_custom_call.1} parent=5 // pred_check_branch
        %78 = sbr.rel (%p75) target = $region12
      $region11: #{tpu_custom_call.1} parent=5 // pred_region
        %s79 = ssub.s32 %s13, 1
      $region12: #{tpu_custom_call.1} parent=5 // pred_fallthru
        _
      %p80 = scmp.lt.s32.totalorder %s13, 2
      // Predicated region
      $region13: #{tpu_custom_call.1} parent=5 // pred_check
        %p81 = pneg %p80
      $region14: #{tpu_custom_call.1} parent=5 // pred_check_branch
        %83 = sbr.rel (%p81) target = $region16
      $region15: #{tpu_custom_call.1} parent=5 // pred_region
        // Predicated region
        $region17: #{tpu_custom_call.1} parent=15 // pred_check
          %p84 = pneg %p33
        $region18: #{tpu_custom_call.1} parent=15 // pred_check_branch
          %86 = sbr.rel (%p84) target = $region20
        $region19: #{tpu_custom_call.1} parent=15 // pred_region
          %s87 = sand.u32 %s23, 1
          %s88 = scalar_lea.sflag [#allocation3], %s87
          %s89 = sand.u32 %s23, 1
          %s90 = smul.addr %s89, 64
          %s91 = scalar_lea.vmem [#allocation2], %s90
          %s92 = smul.u32 4, %s13
          %94 = vsyncadd %s88, 0
          %s95 = smul.addr %s92, 2
          %s96 = smul.addr %s95, 8
          %s97 = scalar_lea.hbm %s0, %s96
          %s98 = sshll.u32 %s97, 4
          %s99 = int_to_ptr.hbm [resolvable:$true] %s98
          %s100 = sshll.u32 %s91, 4
          %s101 = int_to_ptr.vmem [resolvable:$true] %s100
          %106 = dma.hbm_to_vmem [thread:$0]  %s99, 1024, %s101, %s88, 128, 128, 8
        $region20: #{tpu_custom_call.1} parent=15 // pred_fallthru
          _
      $region16: #{tpu_custom_call.1} parent=5 // pred_fallthru
        _
      %p107 = scmp.le.s32.totalorder 1, %s13
      %p108 = scmp.lt.s32.totalorder %s13, 3
      %p109 = pnand %p107, %p108
      %p110 = pneg %p109
      // Predicated region
      $region21: #{tpu_custom_call.1} parent=5 // pred_check
        _
      $region22: #{tpu_custom_call.1} parent=5 // pred_check_branch
        %112 = sbr.rel (%p109) target = $region24
      $region23: #{tpu_custom_call.1} parent=5 // pred_region
        %s113 = ssub.s32 %s13, 1
        %s114 = sand.u32 %s26, 1
        %s115 = scalar_lea.sflag [#allocation3], %s114
        %s116 = sand.u32 %s26, 1
        %s117 = smul.addr %s116, 64
        %s118 = scalar_lea.vmem [#allocation2], %s117
        // Predicated region
        $region25: #{tpu_custom_call.1} parent=23 // pred_check
          %p119 = pneg %p39
        $region26: #{tpu_custom_call.1} parent=23 // pred_check_branch
          %121 = sbr.rel (%p119) target = $region28
        $region27: #{tpu_custom_call.1} parent=23 // pred_region
          %123 = dma.done %s115, 1024
        $region28: #{tpu_custom_call.1} parent=23 // pred_fallthru
          _
        %s124 = sand.u32 %s26, 1
        %s125 = scalar_lea.sflag [#allocation3], %s124
        %s126 = sand.u32 %s26, 1
        %s127 = smul.addr %s126, 64
        %s128 = scalar_lea.vmem [#allocation2], %s127
        %p129 = pneg %p39
        %p130 = pneg %p36
        %p131 = pneg %p65
        %p132 = pneg %p62
        %s133 = sand.u32 %s52, 1
        %s134 = scalar_lea.sflag [#allocation4], %s133
        %s135 = sand.u32 %s52, 1
        %s136 = smul.addr %s135, 64
        %s137 = scalar_lea.vmem [#allocation5], %s136
        %s138 = smul.u32 4, %s18
        %s139 = smul.u32 4, %s18
        %v140 = vld [vmem:[%s118] sm:$0xff]
        %v141 = vld [vmem:[%s118 + $0x8] sm:$0xff]
        %v142 = vld [vmem:[%s118 + $0x10] sm:$0xff]
        %v143 = vld [vmem:[%s118 + $0x18] sm:$0xff]
        %v144 = vld [vmem:[%s118 + $0x20] sm:$0xff]
        %v145 = vld [vmem:[%s118 + $0x28] sm:$0xff]
        %v146 = vld [vmem:[%s118 + $0x30] sm:$0xff]
        %v147 = vld [vmem:[%s118 + $0x38] sm:$0xff]
        %v148 = vmul.f32 %v140, 0.40261996
        %v149 = vmul.f32 %v141, 0.40261996
        %v150 = vmul.f32 %v142, 0.40261996
        %v151 = vmul.f32 %v143, 0.40261996
        %v152 = vmul.f32 %v144, 0.40261996
        %v153 = vmul.f32 %v145, 0.40261996
        %v154 = vmul.f32 %v146, 0.40261996
        %v155 = vmul.f32 %v147, 0.40261996
        %v160 = vrot.slane %v140, 2
        %v161 = vrot.slane %v142, 2
        %v162 = vrot.slane %v144, 2
        %v163 = vrot.slane %v146, 2
        %vm172 = vcmask 1041408
        %v173 = vrot.slane %v140, 6
        %v174 = vrot.slane %v141, 6
        %v175 = vsel %vm172, %v173, %v174
        %v176 = vrot.slane %v142, 6
        %v177 = vrot.slane %v143, 6
        %v178 = vsel %vm172, %v176, %v177
        %v179 = vrot.slane %v144, 6
        %v180 = vrot.slane %v145, 6
        %v181 = vsel %vm172, %v179, %v180
        %v182 = vrot.slane %v146, 6
        %v183 = vrot.slane %v147, 6
        %v184 = vsel %vm172, %v182, %v183
        %vm193 = vcmask 1040384
        %v194 = vsel %vm193, %v160, %v140
        %v195 = vsel %vm193, %v161, %v142
        %v196 = vsel %vm193, %v162, %v144
        %v197 = vsel %vm193, %v163, %v146
        %v198 = vsel %vm172, %v194, %v173
        %v199 = vsel %vm172, %v195, %v176
        %v200 = vsel %vm172, %v196, %v179
        %v201 = vsel %vm172, %v197, %v182
        %v202 = vmul.f32 %v198, 0.054488685
        %v203 = vmul.f32 %v175, 0.054488685
        %v204 = vmul.f32 %v199, 0.054488685
        %v205 = vmul.f32 %v178, 0.054488685
        %v206 = vmul.f32 %v200, 0.054488685
        %v207 = vmul.f32 %v181, 0.054488685
        %v208 = vmul.f32 %v201, 0.054488685
        %v209 = vmul.f32 %v184, 0.054488685
        %v210 = vadd.f32 %v148, %v202
        %v211 = vadd.f32 %v149, %v203
        %v212 = vadd.f32 %v150, %v204
        %v213 = vadd.f32 %v151, %v205
        %v214 = vadd.f32 %v152, %v206
        %v215 = vadd.f32 %v153, %v207
        %v216 = vadd.f32 %v154, %v208
        %v217 = vadd.f32 %v155, %v209
        %v218 = vrot.slane %v140, 1
        %v219 = vrot.slane %v142, 1
        %v220 = vrot.slane %v144, 1
        %v221 = vrot.slane %v146, 1
        %v226 = vrot.slane %v140, 7
        %v227 = vrot.slane %v141, 7
        %v228 = vsel %vm193, %v226, %v227
        %v229 = vrot.slane %v142, 7
        %v230 = vrot.slane %v143, 7
        %v231 = vsel %vm193, %v229, %v230
        %v232 = vrot.slane %v144, 7
        %v233 = vrot.slane %v145, 7
        %v234 = vsel %vm193, %v232, %v233
        %v235 = vrot.slane %v146, 7
        %v236 = vrot.slane %v147, 7
        %v237 = vsel %vm193, %v235, %v236
        %v246 = vsel %vm193, %v218, %v226
        %v247 = vsel %vm193, %v219, %v229
        %v248 = vsel %vm193, %v220, %v232
        %v249 = vsel %vm193, %v221, %v235
        %v250 = vmul.f32 %v246, 0.24420135
        %v251 = vmul.f32 %v228, 0.24420135
        %v252 = vmul.f32 %v247, 0.24420135
        %v253 = vmul.f32 %v231, 0.24420135
        %v254 = vmul.f32 %v248, 0.24420135
        %v255 = vmul.f32 %v234, 0.24420135
        %v256 = vmul.f32 %v249, 0.24420135
        %v257 = vmul.f32 %v237, 0.24420135
        %v258 = vadd.f32 %v210, %v250
        %v259 = vadd.f32 %v211, %v251
        %v260 = vadd.f32 %v212, %v252
        %v261 = vadd.f32 %v213, %v253
        %v262 = vadd.f32 %v214, %v254
        %v263 = vadd.f32 %v215, %v255
        %v264 = vadd.f32 %v216, %v256
        %v265 = vadd.f32 %v217, %v257
        %vm266 = vcmask 1046528
        %v267 = vrot.slane %v141, 1
        %v268 = vsel %vm266, %v218, %v267
        %v269 = vrot.slane %v143, 1
        %v270 = vsel %vm266, %v219, %v269
        %v271 = vrot.slane %v145, 1
        %v272 = vsel %vm266, %v220, %v271
        %v273 = vrot.slane %v147, 1
        %v274 = vsel %vm266, %v221, %v273
        %v287 = vsel %vm266, %v267, %v227
        %v288 = vsel %vm266, %v269, %v230
        %v289 = vsel %vm266, %v271, %v233
        %v290 = vsel %vm266, %v273, %v236
        %v291 = vmul.f32 %v268, 0.24420135
        %v292 = vmul.f32 %v287, 0.24420135
        %v293 = vmul.f32 %v270, 0.24420135
        %v294 = vmul.f32 %v288, 0.24420135
        %v295 = vmul.f32 %v272, 0.24420135
        %v296 = vmul.f32 %v289, 0.24420135
        %v297 = vmul.f32 %v274, 0.24420135
        %v298 = vmul.f32 %v290, 0.24420135
        %v299 = vadd.f32 %v258, %v291
        %v300 = vadd.f32 %v259, %v292
        %v301 = vadd.f32 %v260, %v293
        %v302 = vadd.f32 %v261, %v294
        %v303 = vadd.f32 %v262, %v295
        %v304 = vadd.f32 %v263, %v296
        %v305 = vadd.f32 %v264, %v297
        %v306 = vadd.f32 %v265, %v298
        %vm307 = vcmask 1045504
        %v308 = vrot.slane %v141, 2
        %v309 = vsel %vm307, %v160, %v308
        %v310 = vrot.slane %v143, 2
        %v311 = vsel %vm307, %v161, %v310
        %v312 = vrot.slane %v145, 2
        %v313 = vsel %vm307, %v162, %v312
        %v314 = vrot.slane %v147, 2
        %v315 = vsel %vm307, %v163, %v314
        %v328 = vsel %vm307, %v308, %v141
        %v329 = vsel %vm307, %v310, %v143
        %v330 = vsel %vm307, %v312, %v145
        %v331 = vsel %vm307, %v314, %v147
        %v332 = vsel %vm266, %v328, %v174
        %v333 = vsel %vm266, %v329, %v177
        %v334 = vsel %vm266, %v330, %v180
        %v335 = vsel %vm266, %v331, %v183
        %v336 = vmul.f32 %v309, 0.054488685
        %v337 = vmul.f32 %v332, 0.054488685
        %v338 = vmul.f32 %v311, 0.054488685
        %v339 = vmul.f32 %v333, 0.054488685
        %v340 = vmul.f32 %v313, 0.054488685
        %v341 = vmul.f32 %v334, 0.054488685
        %v342 = vmul.f32 %v315, 0.054488685
        %v343 = vmul.f32 %v335, 0.054488685
        %v344 = vadd.f32 %v299, %v336
        %v345 = vadd.f32 %v300, %v337
        %v346 = vadd.f32 %v301, %v338
        %v347 = vadd.f32 %v302, %v339
        %v348 = vadd.f32 %v303, %v340
        %v349 = vadd.f32 %v304, %v341
        %v350 = vadd.f32 %v305, %v342
        %v351 = vadd.f32 %v306, %v343
        %v352 = vmul.f32 %v344, 0.40261996
        %v353 = vmul.f32 %v345, 0.40261996
        %v354 = vmul.f32 %v346, 0.40261996
        %v355 = vmul.f32 %v347, 0.40261996
        %v356 = vmul.f32 %v348, 0.40261996
        %v357 = vmul.f32 %v349, 0.40261996
        %v358 = vmul.f32 %v350, 0.40261996
        %v359 = vmul.f32 %v351, 0.40261996
        %368 = vrot.lane.b32.xlu0 %v344, 126
        %v369 = vpop.permute.xlu0 %368
        %370 = vrot.lane.b32.xlu0 %v345, 126
        %v371 = vpop.permute.xlu0 %370
        %372 = vrot.lane.b32.xlu0 %v346, 126
        %v373 = vpop.permute.xlu0 %372
        %374 = vrot.lane.b32.xlu0 %v347, 126
        %v375 = vpop.permute.xlu0 %374
        %376 = vrot.lane.b32.xlu0 %v348, 126
        %v377 = vpop.permute.xlu0 %376
        %378 = vrot.lane.b32.xlu0 %v349, 126
        %v379 = vpop.permute.xlu0 %378
        %380 = vrot.lane.b32.xlu0 %v350, 126
        %v381 = vpop.permute.xlu0 %380
        %382 = vrot.lane.b32.xlu0 %v351, 126
        %v383 = vpop.permute.xlu0 %382
        %392 = vrot.lane.b32.xlu0 %v344, 2
        %v393 = vpop.permute.xlu0 %392
        %394 = vrot.lane.b32.xlu0 %v345, 2
        %v395 = vpop.permute.xlu0 %394
        %396 = vrot.lane.b32.xlu0 %v346, 2
        %v397 = vpop.permute.xlu0 %396
        %398 = vrot.lane.b32.xlu0 %v347, 2
        %v399 = vpop.permute.xlu0 %398
        %400 = vrot.lane.b32.xlu0 %v348, 2
        %v401 = vpop.permute.xlu0 %400
        %402 = vrot.lane.b32.xlu0 %v349, 2
        %v403 = vpop.permute.xlu0 %402
        %404 = vrot.lane.b32.xlu0 %v350, 2
        %v405 = vpop.permute.xlu0 %404
        %406 = vrot.lane.b32.xlu0 %v351, 2
        %v407 = vpop.permute.xlu0 %406
        %vm416 = vcmask 7168
        %v417 = vsel %vm416, %v369, %v344
        %v418 = vsel %vm416, %v371, %v345
        %v419 = vsel %vm416, %v373, %v346
        %v420 = vsel %vm416, %v375, %v347
        %v421 = vsel %vm416, %v377, %v348
        %v422 = vsel %vm416, %v379, %v349
        %v423 = vsel %vm416, %v381, %v350
        %v424 = vsel %vm416, %v383, %v351
        %vm425 = vcmask 15360
        %v426 = vsel %vm425, %v417, %v393
        %v427 = vsel %vm425, %v418, %v395
        %v428 = vsel %vm425, %v419, %v397
        %v429 = vsel %vm425, %v420, %v399
        %v430 = vsel %vm425, %v421, %v401
        %v431 = vsel %vm425, %v422, %v403
        %v432 = vsel %vm425, %v423, %v405
        %v433 = vsel %vm425, %v424, %v407
        %v434 = vmul.f32 %v426, 0.054488685
        %v435 = vmul.f32 %v427, 0.054488685
        %v436 = vmul.f32 %v428, 0.054488685
        %v437 = vmul.f32 %v429, 0.054488685
        %v438 = vmul.f32 %v430, 0.054488685
        %v439 = vmul.f32 %v431, 0.054488685
        %v440 = vmul.f32 %v432, 0.054488685
        %v441 = vmul.f32 %v433, 0.054488685
        %v442 = vadd.f32 %v352, %v434
        %v443 = vadd.f32 %v353, %v435
        %v444 = vadd.f32 %v354, %v436
        %v445 = vadd.f32 %v355, %v437
        %v446 = vadd.f32 %v356, %v438
        %v447 = vadd.f32 %v357, %v439
        %v448 = vadd.f32 %v358, %v440
        %v449 = vadd.f32 %v359, %v441
        %450 = vrot.lane.b32.xlu0 %v344, 127
        %v451 = vpop.permute.xlu0 %450
        %452 = vrot.lane.b32.xlu0 %v345, 127
        %v453 = vpop.permute.xlu0 %452
        %454 = vrot.lane.b32.xlu0 %v346, 127
        %v455 = vpop.permute.xlu0 %454
        %456 = vrot.lane.b32.xlu0 %v347, 127
        %v457 = vpop.permute.xlu0 %456
        %458 = vrot.lane.b32.xlu0 %v348, 127
        %v459 = vpop.permute.xlu0 %458
        %460 = vrot.lane.b32.xlu0 %v349, 127
        %v461 = vpop.permute.xlu0 %460
        %462 = vrot.lane.b32.xlu0 %v350, 127
        %v463 = vpop.permute.xlu0 %462
        %464 = vrot.lane.b32.xlu0 %v351, 127
        %v465 = vpop.permute.xlu0 %464
        %474 = vrot.lane.b32.xlu0 %v344, 1
        %v475 = vpop.permute.xlu0 %474
        %476 = vrot.lane.b32.xlu0 %v345, 1
        %v477 = vpop.permute.xlu0 %476
        %478 = vrot.lane.b32.xlu0 %v346, 1
        %v479 = vpop.permute.xlu0 %478
        %480 = vrot.lane.b32.xlu0 %v347, 1
        %v481 = vpop.permute.xlu0 %480
        %482 = vrot.lane.b32.xlu0 %v348, 1
        %v483 = vpop.permute.xlu0 %482
        %484 = vrot.lane.b32.xlu0 %v349, 1
        %v485 = vpop.permute.xlu0 %484
        %486 = vrot.lane.b32.xlu0 %v350, 1
        %v487 = vpop.permute.xlu0 %486
        %488 = vrot.lane.b32.xlu0 %v351, 1
        %v489 = vpop.permute.xlu0 %488
        %v498 = vsel %vm416, %v451, %v475
        %v499 = vsel %vm416, %v453, %v477
        %v500 = vsel %vm416, %v455, %v479
        %v501 = vsel %vm416, %v457, %v481
        %v502 = vsel %vm416, %v459, %v483
        %v503 = vsel %vm416, %v461, %v485
        %v504 = vsel %vm416, %v463, %v487
        %v505 = vsel %vm416, %v465, %v489
        %v506 = vmul.f32 %v498, 0.24420135
        %v507 = vmul.f32 %v499, 0.24420135
        %v508 = vmul.f32 %v500, 0.24420135
        %v509 = vmul.f32 %v501, 0.24420135
        %v510 = vmul.f32 %v502, 0.24420135
        %v511 = vmul.f32 %v503, 0.24420135
        %v512 = vmul.f32 %v504, 0.24420135
        %v513 = vmul.f32 %v505, 0.24420135
        %v514 = vadd.f32 %v442, %v506
        %v515 = vadd.f32 %v443, %v507
        %v516 = vadd.f32 %v444, %v508
        %v517 = vadd.f32 %v445, %v509
        %v518 = vadd.f32 %v446, %v510
        %v519 = vadd.f32 %v447, %v511
        %v520 = vadd.f32 %v448, %v512
        %v521 = vadd.f32 %v449, %v513
        %vm522 = vcmask 121856
        %v523 = vsel %vm522, %v451, %v475
        %v524 = vsel %vm522, %v453, %v477
        %v525 = vsel %vm522, %v455, %v479
        %v526 = vsel %vm522, %v457, %v481
        %v527 = vsel %vm522, %v459, %v483
        %v528 = vsel %vm522, %v461, %v485
        %v529 = vsel %vm522, %v463, %v487
        %v530 = vsel %vm522, %v465, %v489
        %v531 = vmul.f32 %v523, 0.24420135
        %v532 = vmul.f32 %v524, 0.24420135
        %v533 = vmul.f32 %v525, 0.24420135
        %v534 = vmul.f32 %v526, 0.24420135
        %v535 = vmul.f32 %v527, 0.24420135
        %v536 = vmul.f32 %v528, 0.24420135
        %v537 = vmul.f32 %v529, 0.24420135
        %v538 = vmul.f32 %v530, 0.24420135
        %v539 = vadd.f32 %v514, %v531
        %v540 = vadd.f32 %v515, %v532
        %v541 = vadd.f32 %v516, %v533
        %v542 = vadd.f32 %v517, %v534
        %v543 = vadd.f32 %v518, %v535
        %v544 = vadd.f32 %v519, %v536
        %v545 = vadd.f32 %v520, %v537
        %v546 = vadd.f32 %v521, %v538
        %vm547 = vcmask 113664
        %v548 = vsel %vm547, %v369, %v344
        %v549 = vsel %vm547, %v371, %v345
        %v550 = vsel %vm547, %v373, %v346
        %v551 = vsel %vm547, %v375, %v347
        %v552 = vsel %vm547, %v377, %v348
        %v553 = vsel %vm547, %v379, %v349
        %v554 = vsel %vm547, %v381, %v350
        %v555 = vsel %vm547, %v383, %v351
        %v556 = vsel %vm522, %v548, %v393
        %v557 = vsel %vm522, %v549, %v395
        %v558 = vsel %vm522, %v550, %v397
        %v559 = vsel %vm522, %v551, %v399
        %v560 = vsel %vm522, %v552, %v401
        %v561 = vsel %vm522, %v553, %v403
        %v562 = vsel %vm522, %v554, %v405
        %v563 = vsel %vm522, %v555, %v407
        %v564 = vmul.f32 %v556, 0.054488685
        %v565 = vmul.f32 %v557, 0.054488685
        %v566 = vmul.f32 %v558, 0.054488685
        %v567 = vmul.f32 %v559, 0.054488685
        %v568 = vmul.f32 %v560, 0.054488685
        %v569 = vmul.f32 %v561, 0.054488685
        %v570 = vmul.f32 %v562, 0.054488685
        %v571 = vmul.f32 %v563, 0.054488685
        %v572 = vadd.f32 %v539, %v564
        %v573 = vadd.f32 %v540, %v565
        %v574 = vadd.f32 %v541, %v566
        %v575 = vadd.f32 %v542, %v567
        %v576 = vadd.f32 %v543, %v568
        %v577 = vadd.f32 %v544, %v569
        %v578 = vadd.f32 %v545, %v570
        %v579 = vadd.f32 %v546, %v571
        %vm580 = vcmask 130048
        %581 = vst.msk [vmem:[%s137] sm:$0xff] %vm580, %v572
        %582 = vst.msk [vmem:[%s137 + $0x8] sm:$0xff] %vm580, %v573
        %583 = vst.msk [vmem:[%s137 + $0x10] sm:$0xff] %vm580, %v574
        %584 = vst.msk [vmem:[%s137 + $0x18] sm:$0xff] %vm580, %v575
        %585 = vst.msk [vmem:[%s137 + $0x20] sm:$0xff] %vm580, %v576
        %586 = vst.msk [vmem:[%s137 + $0x28] sm:$0xff] %vm580, %v577
        %587 = vst.msk [vmem:[%s137 + $0x30] sm:$0xff] %vm580, %v578
        %588 = vst.msk [vmem:[%s137 + $0x38] sm:$0xff] %vm580, %v579
        %s589 = sand.u32 %s52, 1
        %s590 = scalar_lea.sflag [#allocation4], %s589
        %s591 = sand.u32 %s52, 1
        %s592 = smul.addr %s591, 64
        %s593 = scalar_lea.vmem [#allocation5], %s592
        // Predicated region
        $region29: #{tpu_custom_call.1} parent=23 // pred_check
          %p594 = pneg %p62
        $region30: #{tpu_custom_call.1} parent=23 // pred_check_branch
          %596 = sbr.rel (%p594) target = $region32
        $region31: #{tpu_custom_call.1} parent=23 // pred_region
          %s597 = smul.u32 4, %s18
          %599 = vsyncadd %s590, 0
          %s600 = smul.addr %s597, 2
          %s601 = smul.addr %s600, 8
          %s602 = scalar_lea.hbm %s1, %s601
          %s603 = sshll.u32 %s593, 4
          %s604 = int_to_ptr.vmem [resolvable:$true] %s603
          %s605 = sshll.u32 %s602, 4
          %s606 = int_to_ptr.hbm [resolvable:$true] %s605
          %611 = dma.vmem_to_hbm [thread:$0]  %s604, 1024, %s606, %s590, 128, 128, 8
        $region32: #{tpu_custom_call.1} parent=23 // pred_fallthru
          _
      $region24: #{tpu_custom_call.1} parent=5 // pred_fallthru
        _
      %p612 = scmp.le.s32.totalorder 2, %s13
      // Predicated region
      $region33: #{tpu_custom_call.1} parent=5 // pred_check
        %p613 = pneg %p612
      $region34: #{tpu_custom_call.1} parent=5 // pred_check_branch
        %615 = sbr.rel (%p613) target = $region36
      $region35: #{tpu_custom_call.1} parent=5 // pred_region
        %s616 = ssub.s32 %s13, 2
        // Predicated region
        $region37: #{tpu_custom_call.1} parent=35 // pred_check
          %p617 = pneg %p68
        $region38: #{tpu_custom_call.1} parent=35 // pred_check_branch
          %619 = sbr.rel (%p617) target = $region40
        $region39: #{tpu_custom_call.1} parent=35 // pred_region
          %s620 = sand.u32 %s53, 1
          %s621 = scalar_lea.sflag [#allocation4], %s620
          %s622 = sand.u32 %s53, 1
          %s623 = smul.addr %s622, 64
          %s624 = scalar_lea.vmem [#allocation5], %s623
          %626 = dma.done %s621, 1024
        $region40: #{tpu_custom_call.1} parent=35 // pred_fallthru
          _
      $region36: #{tpu_custom_call.1} parent=5 // pred_fallthru
        _
    $region6: #{tpu_custom_call.1} parent=1 // loop_footer
      %s17 = sadd.s32 1, %s13
    $region7: #{tpu_custom_call.1} parent=1 // loop_footer_branch
      %12 = sbr.rel target = $region3
    $region8: #{tpu_custom_call.1} parent=1 // loop_exit
      _
    %627 = vsyncpa [#allocation3], 1
    %s628 = scalar_lea.sflag [#allocation3], 1
    %629 = vsyncpa %s628, 1
    %630 = vsyncpa [#allocation4], 1
    %s631 = scalar_lea.sflag [#allocation4], 1
    %632 = vsyncpa %s631, 1

</llo_original>
